<compile_context>
chip_gen: v5e
topology: v5e:2x2
jax: 0.10.0
libtpu: 0.0.40
codegen_flags: <defaults>
</compile_context>

<pallas_src>
import functools

import jax
import jax.numpy as jnp
from jax.experimental import pallas as pl
from jax.experimental.pallas import tpu as pltpu

_LANES = 128    # lane width: batch-tile granularity
_CHUNK = 1024   # lanes per inner step (8 f32 vregs per live value)


def _round_up(n: int, m: int) -> int:
    return ((n + m - 1) // m) * m


def _logreg_kernel(xt_ref, w_ref, b_ref, o_ref):
    # xt_ref: (F, TN) f32 VMEM (batch on lanes)
    # w_ref : (F,)    f32 SMEM (scalar weights)
    # b_ref : (1,)    f32 SMEM (scalar bias)
    # o_ref : (1, TN) f32 VMEM (lane-dense output slab)
    f_dim, tn = xt_ref.shape
    chunk = min(_CHUNK, tn)                 # wrapper guarantees tn % chunk == 0
    bias = b_ref[0]
    zb = jnp.full((1, chunk), bias, dtype=jnp.float32)   # hoisted broadcast
    for c in range(tn // chunk):            # static chunk loop -> bounded vregs
        lo = c * chunk
        z = zb
        for f in range(f_dim):              # K=17 contraction: VPU FMAs, no MXU
            z = z + w_ref[f] * xt_ref[pl.ds(f, 1), pl.ds(lo, chunk)]
        # sigmoid(z) = 1 / (1 + exp(-z)); exp + approx reciprocal both on EUP.
        o_ref[pl.ds(0, 1), pl.ds(lo, chunk)] = pl.reciprocal(
            1.0 + jnp.exp(-z), approx=True)


@functools.partial(jax.jit, static_argnames=("block_b",))
def logistic_regression(x, w, b, *, block_b=16384):
    """sigmoid(x @ w + b).

    x: [B, 17] f32, w: [17] (torch [1,17] weight, transposed) f32,
    b: [1] f32  ->  [B, 1] f32 (matches torch.sigmoid(nn.Linear(17,1)(x))).
    """
    B, F = x.shape
    x = x.astype(jnp.float32)
    w = jnp.asarray(w, jnp.float32).reshape(F)
    b = jnp.asarray(b, jnp.float32).reshape(1)

    # Batch tile (lanes per grid step): multiple of 128; once it exceeds the
    # inner chunk it is a multiple of the chunk so in-kernel chunking is exact.
    b_lanes = _round_up(B, _LANES)
    if b_lanes <= _CHUNK:
        tn = b_lanes
    else:
        tn = min(_round_up(block_b, _CHUNK), _round_up(B, _CHUNK))
    b_pad = _round_up(B, tn)

    # Lane-dense layout: features on sublanes, batch on lanes (zero-pad tail).
    xt = jnp.pad(x.T, ((0, 0), (0, b_pad - B)))

    out = pl.pallas_call(
        _logreg_kernel,
        out_shape=jax.ShapeDtypeStruct((1, b_pad), jnp.float32),
        grid_spec=pltpu.PrefetchScalarGridSpec(
            num_scalar_prefetch=0,
            grid=(b_pad // tn,),
            in_specs=[
                pl.BlockSpec((F, tn), lambda i: (0, i)),
                pl.BlockSpec(memory_space=pltpu.MemorySpace.SMEM),  # w scalars
                pl.BlockSpec(memory_space=pltpu.MemorySpace.SMEM),  # bias
            ],
            out_specs=pl.BlockSpec((1, tn), lambda i: (0, i)),
        ),
        compiler_params=pltpu.CompilerParams(
            dimension_semantics=("parallel",),  # v7x: shard batch over both TCs
        ),
    )(xt, w, b)

    return out[0, :B].reshape(B, 1)


if __name__ == "__main__":
    key = jax.random.PRNGKey(0)
    kx, kw, kb = jax.random.split(key, 3)

    B, F = 8, 17  # nn.Linear(17, 1): in_features must be 17
    x = jax.random.normal(kx, (B, F), dtype=jnp.float32)

    # PyTorch-style init U(-1/sqrt(fan_in), 1/sqrt(fan_in)).
    bound = 1.0 / (F ** 0.5)
    w = jax.random.uniform(kw, (F,), minval=-bound, maxval=bound, dtype=jnp.float32)
    b = jax.random.uniform(kb, (1,), minval=-bound, maxval=bound, dtype=jnp.float32)

    out = logistic_regression(x, w, b)
    jax.block_until_ready(out)

    # Reference check in plain JAX.
    ref = jax.nn.sigmoid(x @ w.reshape(F, 1) + b.reshape(1, 1))
    assert out.shape == (B, 1)
    # Approximate reciprocal on the EUP -> slightly looser tolerance.
    assert jnp.allclose(out, ref, atol=5e-3, rtol=5e-3), (out, ref)

    print("KERNEL_OK")
</pallas_src>

<mosaic_0001>
module attributes {stable_mosaic.version = 11 : i64} {
  func.func @_logreg_kernel(%arg0: i32, %arg1: memref<17x128xf32, #tpu.memory_space<vmem>>, %arg2: memref<17xf32, #tpu.memory_space<smem>>, %arg3: memref<1xf32, #tpu.memory_space<smem>>, %arg4: memref<1x128xf32, #tpu.memory_space<vmem>>) attributes {dimension_semantics = [#tpu.dimension_semantics<parallel>], iteration_bounds = array<i64: 1>, scalar_prefetch = 0 : i64, scratch_operands = 0 : i64, tpu.core_type = #tpu.core_type<tc>, window_params = [{transform_indices = @transform_0, window_bounds = array<i64: 17, 128>}, {transform_indices = @transform_1, window_bounds = array<i64: 17>}, {transform_indices = @transform_2, window_bounds = array<i64: 1>}, {transform_indices = @transform_3, window_bounds = array<i64: 1, 128>}]} {
    %c0 = arith.constant 0 : index
    %0 = memref.load %arg3[%c0] : memref<1xf32, #tpu.memory_space<smem>>
    %1 = vector.broadcast %0 : f32 to vector<1x128xf32>
    %c0_0 = arith.constant 0 : index
    %2 = memref.load %arg2[%c0_0] : memref<17xf32, #tpu.memory_space<smem>>
    %c0_1 = arith.constant 0 : index
    %c0_2 = arith.constant 0 : index
    %3 = vector.load %arg1[%c0_1, %c0_2] : memref<17x128xf32, #tpu.memory_space<vmem>>, vector<1x128xf32>
    %4 = vector.broadcast %2 : f32 to vector<1x128xf32>
    %5 = arith.mulf %4, %3 : vector<1x128xf32>
    %6 = arith.addf %1, %5 : vector<1x128xf32>
    %c1 = arith.constant 1 : index
    %7 = memref.load %arg2[%c1] : memref<17xf32, #tpu.memory_space<smem>>
    %c1_3 = arith.constant 1 : index
    %c0_4 = arith.constant 0 : index
    %8 = vector.load %arg1[%c1_3, %c0_4] : memref<17x128xf32, #tpu.memory_space<vmem>>, vector<1x128xf32>
    %9 = vector.broadcast %7 : f32 to vector<1x128xf32>
    %10 = arith.mulf %9, %8 : vector<1x128xf32>
    %11 = arith.addf %6, %10 : vector<1x128xf32>
    %c2 = arith.constant 2 : index
    %12 = memref.load %arg2[%c2] : memref<17xf32, #tpu.memory_space<smem>>
    %c2_5 = arith.constant 2 : index
    %c0_6 = arith.constant 0 : index
    %13 = vector.load %arg1[%c2_5, %c0_6] : memref<17x128xf32, #tpu.memory_space<vmem>>, vector<1x128xf32>
    %14 = vector.broadcast %12 : f32 to vector<1x128xf32>
    %15 = arith.mulf %14, %13 : vector<1x128xf32>
    %16 = arith.addf %11, %15 : vector<1x128xf32>
    %c3 = arith.constant 3 : index
    %17 = memref.load %arg2[%c3] : memref<17xf32, #tpu.memory_space<smem>>
    %c3_7 = arith.constant 3 : index
    %c0_8 = arith.constant 0 : index
    %18 = vector.load %arg1[%c3_7, %c0_8] : memref<17x128xf32, #tpu.memory_space<vmem>>, vector<1x128xf32>
    %19 = vector.broadcast %17 : f32 to vector<1x128xf32>
    %20 = arith.mulf %19, %18 : vector<1x128xf32>
    %21 = arith.addf %16, %20 : vector<1x128xf32>
    %c4 = arith.constant 4 : index
    %22 = memref.load %arg2[%c4] : memref<17xf32, #tpu.memory_space<smem>>
    %c4_9 = arith.constant 4 : index
    %c0_10 = arith.constant 0 : index
    %23 = vector.load %arg1[%c4_9, %c0_10] : memref<17x128xf32, #tpu.memory_space<vmem>>, vector<1x128xf32>
    %24 = vector.broadcast %22 : f32 to vector<1x128xf32>
    %25 = arith.mulf %24, %23 : vector<1x128xf32>
    %26 = arith.addf %21, %25 : vector<1x128xf32>
    %c5 = arith.constant 5 : index
    %27 = memref.load %arg2[%c5] : memref<17xf32, #tpu.memory_space<smem>>
    %c5_11 = arith.constant 5 : index
    %c0_12 = arith.constant 0 : index
    %28 = vector.load %arg1[%c5_11, %c0_12] : memref<17x128xf32, #tpu.memory_space<vmem>>, vector<1x128xf32>
    %29 = vector.broadcast %27 : f32 to vector<1x128xf32>
    %30 = arith.mulf %29, %28 : vector<1x128xf32>
    %31 = arith.addf %26, %30 : vector<1x128xf32>
    %c6 = arith.constant 6 : index
    %32 = memref.load %arg2[%c6] : memref<17xf32, #tpu.memory_space<smem>>
    %c6_13 = arith.constant 6 : index
    %c0_14 = arith.constant 0 : index
    %33 = vector.load %arg1[%c6_13, %c0_14] : memref<17x128xf32, #tpu.memory_space<vmem>>, vector<1x128xf32>
    %34 = vector.broadcast %32 : f32 to vector<1x128xf32>
    %35 = arith.mulf %34, %33 : vector<1x128xf32>
    %36 = arith.addf %31, %35 : vector<1x128xf32>
    %c7 = arith.constant 7 : index
    %37 = memref.load %arg2[%c7] : memref<17xf32, #tpu.memory_space<smem>>
    %c7_15 = arith.constant 7 : index
    %c0_16 = arith.constant 0 : index
    %38 = vector.load %arg1[%c7_15, %c0_16] : memref<17x128xf32, #tpu.memory_space<vmem>>, vector<1x128xf32>
    %39 = vector.broadcast %37 : f32 to vector<1x128xf32>
    %40 = arith.mulf %39, %38 : vector<1x128xf32>
    %41 = arith.addf %36, %40 : vector<1x128xf32>
    %c8 = arith.constant 8 : index
    %42 = memref.load %arg2[%c8] : memref<17xf32, #tpu.memory_space<smem>>
    %c8_17 = arith.constant 8 : index
    %c0_18 = arith.constant 0 : index
    %43 = vector.load %arg1[%c8_17, %c0_18] : memref<17x128xf32, #tpu.memory_space<vmem>>, vector<1x128xf32>
    %44 = vector.broadcast %42 : f32 to vector<1x128xf32>
    %45 = arith.mulf %44, %43 : vector<1x128xf32>
    %46 = arith.addf %41, %45 : vector<1x128xf32>
    %c9 = arith.constant 9 : index
    %47 = memref.load %arg2[%c9] : memref<17xf32, #tpu.memory_space<smem>>
    %c9_19 = arith.constant 9 : index
    %c0_20 = arith.constant 0 : index
    %48 = vector.load %arg1[%c9_19, %c0_20] : memref<17x128xf32, #tpu.memory_space<vmem>>, vector<1x128xf32>
    %49 = vector.broadcast %47 : f32 to vector<1x128xf32>
    %50 = arith.mulf %49, %48 : vector<1x128xf32>
    %51 = arith.addf %46, %50 : vector<1x128xf32>
    %c10 = arith.constant 10 : index
    %52 = memref.load %arg2[%c10] : memref<17xf32, #tpu.memory_space<smem>>
    %c10_21 = arith.constant 10 : index
    %c0_22 = arith.constant 0 : index
    %53 = vector.load %arg1[%c10_21, %c0_22] : memref<17x128xf32, #tpu.memory_space<vmem>>, vector<1x128xf32>
    %54 = vector.broadcast %52 : f32 to vector<1x128xf32>
    %55 = arith.mulf %54, %53 : vector<1x128xf32>
    %56 = arith.addf %51, %55 : vector<1x128xf32>
    %c11 = arith.constant 11 : index
    %57 = memref.load %arg2[%c11] : memref<17xf32, #tpu.memory_space<smem>>
    %c11_23 = arith.constant 11 : index
    %c0_24 = arith.constant 0 : index
    %58 = vector.load %arg1[%c11_23, %c0_24] : memref<17x128xf32, #tpu.memory_space<vmem>>, vector<1x128xf32>
    %59 = vector.broadcast %57 : f32 to vector<1x128xf32>
    %60 = arith.mulf %59, %58 : vector<1x128xf32>
    %61 = arith.addf %56, %60 : vector<1x128xf32>
    %c12 = arith.constant 12 : index
    %62 = memref.load %arg2[%c12] : memref<17xf32, #tpu.memory_space<smem>>
    %c12_25 = arith.constant 12 : index
    %c0_26 = arith.constant 0 : index
    %63 = vector.load %arg1[%c12_25, %c0_26] : memref<17x128xf32, #tpu.memory_space<vmem>>, vector<1x128xf32>
    %64 = vector.broadcast %62 : f32 to vector<1x128xf32>
    %65 = arith.mulf %64, %63 : vector<1x128xf32>
    %66 = arith.addf %61, %65 : vector<1x128xf32>
    %c13 = arith.constant 13 : index
    %67 = memref.load %arg2[%c13] : memref<17xf32, #tpu.memory_space<smem>>
    %c13_27 = arith.constant 13 : index
    %c0_28 = arith.constant 0 : index
    %68 = vector.load %arg1[%c13_27, %c0_28] : memref<17x128xf32, #tpu.memory_space<vmem>>, vector<1x128xf32>
    %69 = vector.broadcast %67 : f32 to vector<1x128xf32>
    %70 = arith.mulf %69, %68 : vector<1x128xf32>
    %71 = arith.addf %66, %70 : vector<1x128xf32>
    %c14 = arith.constant 14 : index
    %72 = memref.load %arg2[%c14] : memref<17xf32, #tpu.memory_space<smem>>
    %c14_29 = arith.constant 14 : index
    %c0_30 = arith.constant 0 : index
    %73 = vector.load %arg1[%c14_29, %c0_30] : memref<17x128xf32, #tpu.memory_space<vmem>>, vector<1x128xf32>
    %74 = vector.broadcast %72 : f32 to vector<1x128xf32>
    %75 = arith.mulf %74, %73 : vector<1x128xf32>
    %76 = arith.addf %71, %75 : vector<1x128xf32>
    %c15 = arith.constant 15 : index
    %77 = memref.load %arg2[%c15] : memref<17xf32, #tpu.memory_space<smem>>
    %c15_31 = arith.constant 15 : index
    %c0_32 = arith.constant 0 : index
    %78 = vector.load %arg1[%c15_31, %c0_32] : memref<17x128xf32, #tpu.memory_space<vmem>>, vector<1x128xf32>
    %79 = vector.broadcast %77 : f32 to vector<1x128xf32>
    %80 = arith.mulf %79, %78 : vector<1x128xf32>
    %81 = arith.addf %76, %80 : vector<1x128xf32>
    %c16 = arith.constant 16 : index
    %82 = memref.load %arg2[%c16] : memref<17xf32, #tpu.memory_space<smem>>
    %c16_33 = arith.constant 16 : index
    %c0_34 = arith.constant 0 : index
    %83 = vector.load %arg1[%c16_33, %c0_34] : memref<17x128xf32, #tpu.memory_space<vmem>>, vector<1x128xf32>
    %84 = vector.broadcast %82 : f32 to vector<1x128xf32>
    %85 = arith.mulf %84, %83 : vector<1x128xf32>
    %86 = arith.addf %81, %85 : vector<1x128xf32>
    %cst = arith.constant 0.000000e+00 : f32
    %87 = vector.broadcast %cst : f32 to vector<1x128xf32>
    %88 = arith.subf %87, %86 : vector<1x128xf32>
    %89 = math.exp %88 : vector<1x128xf32>
    %cst_35 = arith.constant 1.000000e+00 : f32
    %90 = vector.broadcast %cst_35 : f32 to vector<1x128xf32>
    %91 = arith.addf %90, %89 : vector<1x128xf32>
    %92 = tpu.reciprocal %91 {approx = true} : vector<1x128xf32> -> vector<1x128xf32>
    %c0_36 = arith.constant 0 : index
    %c0_37 = arith.constant 0 : index
    %93 = vector.load %arg4[%c0_36, %c0_37] : memref<1x128xf32, #tpu.memory_space<vmem>>, vector<1x128xf32>
    tpu.vector_store %arg4[%c0_36, %c0_37], %92 {strides = array<i32>} : memref<1x128xf32, #tpu.memory_space<vmem>>, vector<1x128xf32>,
    return
  }
  func.func @transform_0(%arg0: i32) -> (i32, i32) {
    %c0_i32 = arith.constant 0 : i32
    %c0_i32_0 = arith.constant 0 : i32
    return %c0_i32, %arg0 : i32, i32
  }
  func.func @transform_1(%arg0: i32) -> i32 {
    %c0_i32 = arith.constant 0 : i32
    %c0_i32_0 = arith.constant 0 : i32
    return %c0_i32 : i32
  }
  func.func @transform_2(%arg0: i32) -> i32 {
    %c0_i32 = arith.constant 0 : i32
    %c0_i32_0 = arith.constant 0 : i32
    return %c0_i32 : i32
  }
  func.func @transform_3(%arg0: i32) -> (i32, i32) {
    %c0_i32 = arith.constant 0 : i32
    %c0_i32_0 = arith.constant 0 : i32
    return %c0_i32, %arg0 : i32, i32
  }
}

</mosaic_0001>

<llo_original>
// kernel: logistic_regression.1
$region0: #{logistic_regression.1}
  #allocation0 [shape = 'u32[]', space=smem, size = 0x4, offset = 0x4, fixed_abs, tag = 'smem constant byte address 0x4 - core index']
  #allocation1 [shape = 'u32[72,128]{1,0:T(1,128)}', space=vmem, size = 0x9000, scoped, tag = 'internal scratch']
  #allocation2 [shape = 'f32[1]{0:T(128)S(6)}', space=smem, size = 0x200, scoped, tag = 'scoped memory for logistic_regression.1']
  %s0 = inlined_call_operand.vmem [shape: f32[17,128], index: 0, kind: input, shape index: {}]
  %s1 = inlined_call_operand.vmem [shape: f32[17], index: 1, kind: input, shape index: {}]
  %s2 = inlined_call_operand.<no memory space> [shape: f32[1], index: 2, kind: input, shape index: {}]
  %s3 = inlined_call_operand.vmem [shape: f32[1,128], index: 3, kind: output, shape index: {}]
  %s4 = sld [smem:[#allocation0]]
  $region26: #{logistic_regression.1} parent=0
    _
  %s6 = ssub.s32 1, %s4
  %s7 = scalar_select 0, %s6, %s4
  %8 = sst [smem:[#allocation2]] %s2
  $region1: #{logistic_regression.1} parent=0
    #allocation3 [shape = 'u8[512]{0}', space=smem, size = 0x200, scoped, tag = 'input window, operand 1, single buffered']
    #allocation4 [shape = 's32[1]{0}', space=sflag, size = 0x4, scoped, tag = 'scoped memory for logistic_regression.1']
    %9 = vsyncpa [#allocation4], 0
    // Predicated region
    $region2: #{logistic_regression.1} parent=1 // pred_check
      _
    $region3: #{logistic_regression.1} parent=1 // pred_check_branch
      %11 = sbr.rel (0) target = $region5
    $region4: #{logistic_regression.1} parent=1 // pred_region
      _
    $region5: #{logistic_regression.1} parent=1 // pred_fallthru
      _
    // Predicated region
    $region6: #{logistic_regression.1} parent=1 // pred_check
      _
    $region7: #{logistic_regression.1} parent=1 // pred_check_branch
      %13 = sbr.rel (0) target = $region9
    $region8: #{logistic_regression.1} parent=1 // pred_region
      %15 = vsyncadd [#allocation4], 0
      %s17 = sshll.u32 %s1, 4
      %s18 = int_to_ptr.vmem [resolvable:$true] %s17
      %20 = dma.vmem_to_smem %s18, 16, [#allocation3], [#allocation4]
    $region9: #{logistic_regression.1} parent=1 // pred_fallthru
      _
    // Predicated region
    $region10: #{logistic_regression.1} parent=1 // pred_check
      _
    $region11: #{logistic_regression.1} parent=1 // pred_check_branch
      %22 = sbr.rel (0) target = $region13
    $region12: #{logistic_regression.1} parent=1 // pred_region
      _
    $region13: #{logistic_regression.1} parent=1 // pred_fallthru
      _
    // Predicated region
    $region14: #{logistic_regression.1} parent=1 // pred_check
      _
    $region15: #{logistic_regression.1} parent=1 // pred_check_branch
      %24 = sbr.rel (0) target = $region17
    $region16: #{logistic_regression.1} parent=1 // pred_region
      %26 = dma.done [#allocation4], 16
    $region17: #{logistic_regression.1} parent=1 // pred_fallthru
      _
    %27 = sfence
    %s28 = sld [smem:[#allocation2]]
    %v29 = vstv %s28
    %s30 = sld [smem:[#allocation3]]
    %v31 = vld [vmem:[%s0] sm:$0x1]
    %v32 = vstv %s30
    %v33 = vmul.f32 %v32, %v31
    %v34 = vadd.f32 %v29, %v33
    %s35 = sld [smem:[#allocation3 + $0x1]]
    %v36 = vld [vmem:[%s0 + $0x1] sm:$0x1]
    %v37 = vstv %s35
    %v38 = vmul.f32 %v37, %v36
    %v39 = vadd.f32 %v34, %v38
    %s40 = sld [smem:[#allocation3 + $0x2]]
    %v41 = vld [vmem:[%s0 + $0x2] sm:$0x1]
    %v42 = vstv %s40
    %v43 = vmul.f32 %v42, %v41
    %v44 = vadd.f32 %v39, %v43
    %s45 = sld [smem:[#allocation3 + $0x3]]
    %v46 = vld [vmem:[%s0 + $0x3] sm:$0x1]
    %v47 = vstv %s45
    %v48 = vmul.f32 %v47, %v46
    %v49 = vadd.f32 %v44, %v48
    %s50 = sld [smem:[#allocation3 + $0x4]]
    %v51 = vld [vmem:[%s0 + $0x4] sm:$0x1]
    %v52 = vstv %s50
    %v53 = vmul.f32 %v52, %v51
    %v54 = vadd.f32 %v49, %v53
    %s55 = sld [smem:[#allocation3 + $0x5]]
    %v56 = vld [vmem:[%s0 + $0x5] sm:$0x1]
    %v57 = vstv %s55
    %v58 = vmul.f32 %v57, %v56
    %v59 = vadd.f32 %v54, %v58
    %s60 = sld [smem:[#allocation3 + $0x6]]
    %v61 = vld [vmem:[%s0 + $0x6] sm:$0x1]
    %v62 = vstv %s60
    %v63 = vmul.f32 %v62, %v61
    %v64 = vadd.f32 %v59, %v63
    %s65 = sld [smem:[#allocation3 + $0x7]]
    %v66 = vld [vmem:[%s0 + $0x7] sm:$0x1]
    %v67 = vstv %s65
    %v68 = vmul.f32 %v67, %v66
    %v69 = vadd.f32 %v64, %v68
    %s70 = sld [smem:[#allocation3 + $0x8]]
    %v71 = vld [vmem:[%s0 + $0x8] sm:$0x1]
    %v72 = vstv %s70
    %v73 = vmul.f32 %v72, %v71
    %v74 = vadd.f32 %v69, %v73
    %s75 = sld [smem:[#allocation3 + $0x9]]
    %v76 = vld [vmem:[%s0 + $0x9] sm:$0x1]
    %v77 = vstv %s75
    %v78 = vmul.f32 %v77, %v76
    %v79 = vadd.f32 %v74, %v78
    %s80 = sld [smem:[#allocation3 + $0xa]]
    %v81 = vld [vmem:[%s0 + $0xa] sm:$0x1]
    %v82 = vstv %s80
    %v83 = vmul.f32 %v82, %v81
    %v84 = vadd.f32 %v79, %v83
    %s85 = sld [smem:[#allocation3 + $0xb]]
    %v86 = vld [vmem:[%s0 + $0xb] sm:$0x1]
    %v87 = vstv %s85
    %v88 = vmul.f32 %v87, %v86
    %v89 = vadd.f32 %v84, %v88
    %s90 = sld [smem:[#allocation3 + $0xc]]
    %v91 = vld [vmem:[%s0 + $0xc] sm:$0x1]
    %v92 = vstv %s90
    %v93 = vmul.f32 %v92, %v91
    %v94 = vadd.f32 %v89, %v93
    %s95 = sld [smem:[#allocation3 + $0xd]]
    %v96 = vld [vmem:[%s0 + $0xd] sm:$0x1]
    %v97 = vstv %s95
    %v98 = vmul.f32 %v97, %v96
    %v99 = vadd.f32 %v94, %v98
    %s100 = sld [smem:[#allocation3 + $0xe]]
    %v101 = vld [vmem:[%s0 + $0xe] sm:$0x1]
    %v102 = vstv %s100
    %v103 = vmul.f32 %v102, %v101
    %v104 = vadd.f32 %v99, %v103
    %s105 = sld [smem:[#allocation3 + $0xf]]
    %v106 = vld [vmem:[%s0 + $0xf] sm:$0x1]
    %v107 = vstv %s105
    %v108 = vmul.f32 %v107, %v106
    %v109 = vadd.f32 %v104, %v108
    %s110 = sld [smem:[#allocation3 + $0x10]]
    %v111 = vld [vmem:[%s0 + $0x10] sm:$0x1]
    %v112 = vstv %s110
    %v113 = vmul.f32 %v112, %v111
    %v114 = vadd.f32 %v109, %v113
    %v115 = vsub.f32 0.0, %v114
    %v116 = vmul.f32 %v115, 1.442695
    %v117 = vpow.pop %v116
    %v118 = vadd.f32 %v117, 1.0
    %v119 = vrcp.pop %v118
    %120 = vst [vmem:[%s3] sm:$0x1] %v119
    // Predicated region
    $region18: #{logistic_regression.1} parent=1 // pred_check
      _
    $region19: #{logistic_regression.1} parent=1 // pred_check_branch
      %122 = sbr.rel (0) target = $region21
    $region20: #{logistic_regression.1} parent=1 // pred_region
      _
    $region21: #{logistic_regression.1} parent=1 // pred_fallthru
      _
    // Predicated region
    $region22: #{logistic_regression.1} parent=1 // pred_check
      _
    $region23: #{logistic_regression.1} parent=1 // pred_check_branch
      %124 = sbr.rel (0) target = $region25
    $region24: #{logistic_regression.1} parent=1 // pred_region
      _
    $region25: #{logistic_regression.1} parent=1 // pred_fallthru
      _
    %125 = vsyncpa [#allocation4], 1

</llo_original>
